<compile_context>
chip_gen: v7x
topology: tpu7x:2x2x1
jax: 0.10.0
libtpu: 0.0.40
codegen_flags: <defaults>
</compile_context>

<pallas_src>
import jax
import jax.numpy as jnp
from jax.experimental import pallas as pl
from jax.experimental.pallas import tpu as pltpu

_TILE = 256  # betas packed across sublanes per grid step (multiple of 8)


def _ising_kernel(beta_ref, out_ref):
    # beta_ref: (Bk, 1) f32 in VMEM; out_ref: (Bk, 16) f32 in VMEM.
    Bk = out_ref.shape[0]

    b = beta_ref[...]                      # (Bk, 1)
    ep = jnp.exp(b)                        # exp(beta)          (EUP)
    em = pl.reciprocal(ep)                 # exact exp(-beta)   (no 2nd EUP push)
    # Hoisted lane-broadcasts (JAX does not CSE broadcast_in_dim).
    c0 = jnp.broadcast_to(ep + em, (Bk, 16))   # 2*cosh(beta) -> leg value 0
    c1 = jnp.broadcast_to(ep - em, (Bk, 16))   # 2*sinh(beta) -> leg value 1

    # Lane index encodes the four binary legs: n = 8*i + 4*j + 2*k + l.
    n = jax.lax.broadcasted_iota(jnp.int32, (Bk, 16), 1)
    i = (n >> 3) & 1
    j = (n >> 2) & 1
    k = (n >> 1) & 1
    l = n & 1

    def c(bit):
        return jnp.where(bit == 1, c1, c0)

    prod = c(i) * c(j) * c(k) * c(l)
    even = (i ^ j ^ k ^ l) == 0
    # Zero odd-parity entries before the sqrt: never produces NaN, and the
    # even-parity products contain an even power of sinh so they are >= 0.
    out_ref[...] = 0.5 * jnp.sqrt(jnp.where(even, prod, 0.0))


def _ising_pallas(betas_2d):
    """betas_2d: (B, 1) f32 -> (B, 16) f32 lane-dense Ising tensors."""
    B = betas_2d.shape[0]
    if B <= _TILE:
        # Single step, whole arrays as one block (full-extent blocks are
        # exempt from the (8,128) divisibility rule): no grid, no padding.
        return pl.pallas_call(
            _ising_kernel,
            out_shape=jax.ShapeDtypeStruct((B, 16), jnp.float32),
            in_specs=[pl.BlockSpec(memory_space=pltpu.MemorySpace.VMEM)],
            out_specs=pl.BlockSpec(memory_space=pltpu.MemorySpace.VMEM),
        )(betas_2d)

    # Very large sweeps: one grid step per 256 sublane-packed betas; the axis
    # is "parallel" so v7x's two TensorCores split the sweep.
    Bp = ((B + _TILE - 1) // _TILE) * _TILE
    betas_p = betas_2d
    if Bp != B:
        betas_p = jnp.pad(betas_2d, ((0, Bp - B), (0, 0)), constant_values=1.0)
    flat = pl.pallas_call(
        _ising_kernel,
        out_shape=jax.ShapeDtypeStruct((Bp, 16), jnp.float32),
        grid=(Bp // _TILE,),
        in_specs=[pl.BlockSpec((_TILE, 1), lambda g: (g, 0))],
        out_specs=pl.BlockSpec((_TILE, 16), lambda g: (g, 0)),
        compiler_params=pltpu.CompilerParams(dimension_semantics=("parallel",)),
    )(betas_p)
    return flat if Bp == B else flat[:B]


def class_ising(beta):
    """Pallas equivalent of func.class_Ising(beta): returns T[2,2,2,2] f32."""
    betas = jnp.asarray(beta, dtype=jnp.float32).reshape(1, 1)
    # (1,16) -> (2,2,2,2) is a bitcast-reshape (same row-major layout): free.
    return _ising_pallas(betas).reshape(2, 2, 2, 2)


def class_ising_batched(betas):
    """Batched variant for beta sweeps: betas[B] -> T[B,2,2,2,2] f32."""
    betas = jnp.atleast_1d(jnp.asarray(betas, dtype=jnp.float32))
    B = betas.shape[0]
    return _ising_pallas(betas.reshape(B, 1)).reshape(B, 2, 2, 2, 2)


def layer_gen_forward(beta):
    """Initial-tensor generator forward (== func.class_Ising(beta))."""
    return class_ising(beta)


def _reference(beta):
    """Plain-JAX reference: einsum construction from the Boltzmann sqrt."""
    beta = jnp.asarray(beta, dtype=jnp.float32)
    W = jnp.stack(
        [
            jnp.stack([jnp.sqrt(jnp.cosh(beta)), jnp.sqrt(jnp.sinh(beta))]),
            jnp.stack([jnp.sqrt(jnp.cosh(beta)), -jnp.sqrt(jnp.sinh(beta))]),
        ]
    ).astype(jnp.float32)
    return jnp.einsum("ai,aj,ak,al->ijkl", W, W, W, W)


if __name__ == "__main__":
    key = jax.random.PRNGKey(0)
    k1, k2 = jax.random.split(key)

    # Scalar inverse temperature near the Ising critical point.
    beta = 0.4 + 0.1 * jax.random.uniform(k1, (), dtype=jnp.float32)
    T = jax.block_until_ready(layer_gen_forward(beta))
    ref = _reference(beta)
    assert T.shape == (2, 2, 2, 2)
    assert T.dtype == jnp.float32
    assert jnp.allclose(T, ref, atol=1e-5, rtol=1e-5), (T, ref)

    # Batched beta sweeps: exercise the single-block path (B<=256) and the
    # megacore-parallel grid path (B>256, not a multiple of the tile).
    for B in (4, 12, 300):
        betas = 0.2 + 0.8 * jax.random.uniform(k2, (B,), dtype=jnp.float32)
        Tb = jax.block_until_ready(class_ising_batched(betas))
        refb = jax.vmap(_reference)(betas)
        assert Tb.shape == (B, 2, 2, 2, 2)
        assert Tb.dtype == jnp.float32
        assert jnp.allclose(Tb, refb, atol=1e-5, rtol=1e-5), (B,)

    print("KERNEL_OK")
</pallas_src>

<mosaic_0001>
module attributes {stable_mosaic.version = 11 : i64} {
  func.func @_ising_kernel(%arg0: memref<1x1xf32, #tpu.memory_space<vmem>>, %arg1: memref<1x16xf32, #tpu.memory_space<vmem>>) attributes {dimension_semantics = [], scalar_prefetch = 0 : i64, scratch_operands = 0 : i64, tpu.core_type = #tpu.core_type<tc>} {
    %c0 = arith.constant 0 : index
    %c0_0 = arith.constant 0 : index
    %0 = vector.load %arg0[%c0, %c0_0] : memref<1x1xf32, #tpu.memory_space<vmem>>, vector<1x1xf32>
    %1 = math.exp %0 : vector<1x1xf32>
    %2 = tpu.reciprocal %1 : vector<1x1xf32> -> vector<1x1xf32>
    %3 = arith.addf %1, %2 : vector<1x1xf32>
    %4 = vector.shape_cast %3 : vector<1x1xf32> to vector<1x1xf32>
    %5 = vector.broadcast %4 : vector<1x1xf32> to vector<1x16xf32>
    %6 = arith.subf %1, %2 : vector<1x1xf32>
    %7 = vector.shape_cast %6 : vector<1x1xf32> to vector<1x1xf32>
    %8 = vector.broadcast %7 : vector<1x1xf32> to vector<1x16xf32>
    %9 = tpu.iota {dimensions = array<i32: 1>} : vector<1x16xi32>
    %c3_i32 = arith.constant 3 : i32
    %10 = vector.broadcast %c3_i32 : i32 to vector<1x16xi32>
    %11 = arith.shrsi %9, %10 : vector<1x16xi32>
    %c1_i32 = arith.constant 1 : i32
    %12 = vector.broadcast %c1_i32 : i32 to vector<1x16xi32>
    %13 = arith.andi %11, %12 : vector<1x16xi32>
    %c2_i32 = arith.constant 2 : i32
    %14 = vector.broadcast %c2_i32 : i32 to vector<1x16xi32>
    %15 = arith.shrsi %9, %14 : vector<1x16xi32>
    %c1_i32_1 = arith.constant 1 : i32
    %16 = vector.broadcast %c1_i32_1 : i32 to vector<1x16xi32>
    %17 = arith.andi %15, %16 : vector<1x16xi32>
    %c1_i32_2 = arith.constant 1 : i32
    %18 = vector.broadcast %c1_i32_2 : i32 to vector<1x16xi32>
    %19 = arith.shrsi %9, %18 : vector<1x16xi32>
    %c1_i32_3 = arith.constant 1 : i32
    %20 = vector.broadcast %c1_i32_3 : i32 to vector<1x16xi32>
    %21 = arith.andi %19, %20 : vector<1x16xi32>
    %c1_i32_4 = arith.constant 1 : i32
    %22 = vector.broadcast %c1_i32_4 : i32 to vector<1x16xi32>
    %23 = arith.andi %9, %22 : vector<1x16xi32>
    %c1_i32_5 = arith.constant 1 : i32
    %24 = vector.broadcast %c1_i32_5 : i32 to vector<1x16xi32>
    %25 = arith.cmpi eq, %13, %24 : vector<1x16xi32>
    %26 = arith.select %25, %8, %5 : vector<1x16xi1>, vector<1x16xf32>
    %c1_i32_6 = arith.constant 1 : i32
    %27 = vector.broadcast %c1_i32_6 : i32 to vector<1x16xi32>
    %28 = arith.cmpi eq, %17, %27 : vector<1x16xi32>
    %29 = arith.select %28, %8, %5 : vector<1x16xi1>, vector<1x16xf32>
    %30 = arith.mulf %26, %29 : vector<1x16xf32>
    %c1_i32_7 = arith.constant 1 : i32
    %31 = vector.broadcast %c1_i32_7 : i32 to vector<1x16xi32>
    %32 = arith.cmpi eq, %21, %31 : vector<1x16xi32>
    %33 = arith.select %32, %8, %5 : vector<1x16xi1>, vector<1x16xf32>
    %34 = arith.mulf %30, %33 : vector<1x16xf32>
    %c1_i32_8 = arith.constant 1 : i32
    %35 = vector.broadcast %c1_i32_8 : i32 to vector<1x16xi32>
    %36 = arith.cmpi eq, %23, %35 : vector<1x16xi32>
    %37 = arith.select %36, %8, %5 : vector<1x16xi1>, vector<1x16xf32>
    %38 = arith.mulf %34, %37 : vector<1x16xf32>
    %39 = arith.xori %13, %17 : vector<1x16xi32>
    %40 = arith.xori %39, %21 : vector<1x16xi32>
    %41 = arith.xori %40, %23 : vector<1x16xi32>
    %c0_i32 = arith.constant 0 : i32
    %42 = vector.broadcast %c0_i32 : i32 to vector<1x16xi32>
    %43 = arith.cmpi eq, %41, %42 : vector<1x16xi32>
    %cst = arith.constant 0.000000e+00 : f32
    %44 = vector.broadcast %cst : f32 to vector<1x16xf32>
    %45 = arith.select %43, %38, %44 : vector<1x16xi1>, vector<1x16xf32>
    %46 = math.sqrt %45 : vector<1x16xf32>
    %cst_9 = arith.constant 5.000000e-01 : f32
    %47 = vector.broadcast %cst_9 : f32 to vector<1x16xf32>
    %48 = arith.mulf %47, %46 : vector<1x16xf32>
    %c0_10 = arith.constant 0 : index
    %c0_11 = arith.constant 0 : index
    %49 = vector.load %arg1[%c0_10, %c0_11] : memref<1x16xf32, #tpu.memory_space<vmem>>, vector<1x16xf32>
    tpu.vector_store %arg1[%c0_10, %c0_11], %48 {strides = array<i32>} : memref<1x16xf32, #tpu.memory_space<vmem>>, vector<1x16xf32>,
    return
  }
}

</mosaic_0001>

<llo_original>
// kernel: tpu_custom_call.1
$region0: #{tpu_custom_call.1}
  #allocation0 [shape = 'u32[]', space=smem, size = 0x4, offset = 0x4, fixed_abs, tag = 'smem constant byte address 0x4 - core index']
  #allocation1 [shape = 'u32[144,128]{1,0:T(1,128)}', space=vmem, size = 0x12000, scoped, tag = 'internal scratch']
  #allocation2 [shape = 'f32[1,1]{1,0:T(1,128)S(1)}', space=vmem, size = 0x200, scoped, tag = 'scoped memory for tpu_custom_call.1']
  %s0 = inlined_call_operand.<no memory space> [shape: f32[1,1], index: 0, kind: input, shape index: {}]
  %s1 = inlined_call_operand.hbm [shape: f32[1,16], index: 1, kind: output, shape index: {}]
  %s2 = sld [smem:[#allocation0]]
  $region14: #{tpu_custom_call.1} parent=0
    _
  %s4 = ssub.s32 1, %s2
  %s5 = scalar_select 0, %s4, %s2
  %v6 = vstv %s0
  %7 = vst [vmem:[#allocation2] sm:$0x1] %v6
  $region1: #{tpu_custom_call.1} parent=0
    #allocation3 [shape = 'u8[512]{0}', space=vmem, size = 0x400, scoped, tag = 'output window, operand 0, single buffered']
    #allocation4 [shape = 's32[1]{0}', space=sflag, size = 0x4, scoped, tag = 'scoped memory for tpu_custom_call.1']
    %8 = vsyncpa [#allocation4], 0
    // Predicated region
    $region2: #{tpu_custom_call.1} parent=1 // pred_check
      _
    $region3: #{tpu_custom_call.1} parent=1 // pred_check_branch
      %10 = sbr.rel (0) target = $region5
    $region4: #{tpu_custom_call.1} parent=1 // pred_region
      _
    $region5: #{tpu_custom_call.1} parent=1 // pred_fallthru
      _
    %v11 = vld [vmem:[#allocation2] sm:$0x1]
    %v12 = vmul.f32 %v11, 1.442695
    %v13 = vpow.pop %v12
    %v14 = vrcp.pop %v13
    %v15 = vadd.f32 %v13, %v14
    %17 = vset.pattern.permute.xlu0 0
    %18 = vperm.xlu0 %17, %v15
    %v19 = vpop.permute.xlu0 %18
    %v21 = vlaneseq
    %v22 = vshrl.u32 %v21, 7
    %v23 = vsub.s32 0, %v22
    %v24 = vrot.slane %v19, %v23
    %v25 = vsub.f32 %v13, %v14
    %27 = vset.pattern.permute.xlu0 0
    %28 = vperm.xlu0 %27, %v25
    %v29 = vpop.permute.xlu0 %28
    %v31 = vlaneseq
    %v32 = vshrl.u32 %v31, 7
    %v33 = vsub.s32 0, %v32
    %v34 = vrot.slane %v29, %v33
    %v35 = vlaneseq
    %v36 = vand.u32 %v35, 127
    %v37 = vshra.s32 %v36, 3
    %v38 = vand.u32 %v37, 1
    %v39 = vshra.s32 %v36, 2
    %v40 = vand.u32 %v39, 1
    %v41 = vshra.s32 %v36, 1
    %v42 = vand.u32 %v41, 1
    %v43 = vand.u32 %v36, 1
    %vm44 = vcmp.eq.s32.totalorder %v38, 1
    %v45 = vsel %vm44, %v34, %v24
    %vm46 = vcmp.eq.s32.totalorder %v40, 1
    %v47 = vsel %vm46, %v34, %v24
    %v48 = vmul.f32 %v45, %v47
    %vm49 = vcmp.eq.s32.totalorder %v42, 1
    %v50 = vsel %vm49, %v34, %v24
    %v51 = vmul.f32 %v48, %v50
    %vm52 = vcmp.eq.s32.totalorder %v43, 1
    %v53 = vsel %vm52, %v34, %v24
    %v54 = vmul.f32 %v51, %v53
    %v55 = vxor.u32 %v38, %v40
    %v56 = vxor.u32 %v55, %v42
    %v57 = vxor.u32 %v56, %v43
    %vm58 = vcmp.eq.s32.totalorder %v57, 0
    %v59 = vsel %vm58, %v54, 0.0
    %v60 = vrsqrt.pop %v59
    %v61 = vmul.f32 %v59, %v60
    %vm62 = vcmp.eq.f32.partialorder %v59, inf
    %v63 = vsel %vm62, %v59, %v61
    %vm64 = vcmp.eq.f32.partialorder %v59, 0.0
    %v65 = vand.u32 %v59, 2147483648
    %v66 = vsel %vm64, %v65, %v63
    %v67 = vmul.f32 %v66, 0.5
    %vm68 = vcmask 122880
    %69 = vst.msk [vmem:[#allocation3] sm:$0x1] %vm68, %v67
    // Predicated region
    $region6: #{tpu_custom_call.1} parent=1 // pred_check
      _
    $region7: #{tpu_custom_call.1} parent=1 // pred_check_branch
      %71 = sbr.rel (0) target = $region9
    $region8: #{tpu_custom_call.1} parent=1 // pred_region
      %s73 = ssub.s32 16, 16
      %74 = vsyncadd [#allocation4], %s73
      %s76 = sshll.u32 [#allocation3], 4
      %s77 = int_to_ptr.vmem [resolvable:$true] %s76
      %79 = dma.vmem_to_hbm [thread:$0]  %s77, 16, %s1, [#allocation4]
    $region9: #{tpu_custom_call.1} parent=1 // pred_fallthru
      _
    // Predicated region
    $region10: #{tpu_custom_call.1} parent=1 // pred_check
      _
    $region11: #{tpu_custom_call.1} parent=1 // pred_check_branch
      %81 = sbr.rel (0) target = $region13
    $region12: #{tpu_custom_call.1} parent=1 // pred_region
      %82 = dma.done [#allocation4], 16
    $region13: #{tpu_custom_call.1} parent=1 // pred_fallthru
      _
    %83 = vsyncpa [#allocation4], 1

</llo_original>
